<compile_context>
chip_gen: v7x
topology: tpu7x:2x2x1
jax: 0.10.0
libtpu: 0.0.40
codegen_flags: <defaults>
</compile_context>

<pallas_src>
import jax
import jax.numpy as jnp
from jax.experimental import pallas as pl
from jax.experimental.pallas import tpu as pltpu

EPS = 1e-5
NEG_SLOPE = 0.2


def _round_up(x, m):
    return (x + m - 1) // m * m


def _matmul_stats_kernel(p_ref, w_ref, y_ref, stats_ref):
    # Pass 1: conv-as-matmul for one M tile + per-tile partial BN stats.
    # p_ref: (tm, K) bf16 patches (LeakyReLU already applied in the wrapper)
    # w_ref: (K, OCp) bf16 reshaped conv weight
    # y_ref: (tm, OCp) f32 conv output tile
    # stats_ref: (8, OCp) f32 — row 0 = sum(y), row 1 = sum(y*y), rest zero
    y = jnp.dot(p_ref[...], w_ref[...], preferred_element_type=jnp.float32)
    y_ref[...] = y
    s1 = jnp.sum(y, axis=0, keepdims=True)       # (1, OCp)
    s2 = jnp.sum(y * y, axis=0, keepdims=True)   # (1, OCp)
    pad = jnp.zeros((6, y.shape[1]), jnp.float32)
    stats_ref[...] = jnp.concatenate([s1, s2, pad], axis=0)


def _bn_apply_kernel(y_ref, scale_ref, shift_ref, o_ref):
    # Pass 2: apply global batch statistics: y * scale + shift (per channel).
    o_ref[...] = y_ref[...] * scale_ref[...] + shift_ref[...]


def conv_bn_leaky(x, weight, gamma, beta, *, stride=2, padding=1):
    """x: (N, C, H, W) f32, weight: (OC, C, kh, kw), gamma/beta: (OC,)."""
    N, C, H, W = x.shape
    OC, _, KH, KW = weight.shape
    Ho = (H + 2 * padding - KH) // stride + 1
    Wo = (W + 2 * padding - KW) // stride + 1

    # LeakyReLU(0.2) applied once to x; conv's zero padding happens after the
    # activation in the PyTorch module and leaky(0) == 0, so this is exact.
    xa = jnp.where(x >= 0.0, x, NEG_SLOPE * x)

    # --- glue: pad + im2col (static slicing) ---
    xp = jnp.pad(xa, ((0, 0), (0, 0), (padding, padding), (padding, padding)))
    slices = []
    for kh in range(KH):
        for kw in range(KW):
            slices.append(
                xp[:, :, kh:kh + stride * Ho:stride, kw:kw + stride * Wo:stride]
            )  # (N, C, Ho, Wo)
    patches = jnp.stack(slices, axis=2)                      # (N, C, KH*KW, Ho, Wo)
    patches = patches.reshape(N, C * KH * KW, Ho, Wo)
    patches = patches.transpose(0, 2, 3, 1).reshape(N * Ho * Wo, C * KH * KW)

    M, K = patches.shape
    OCp = _round_up(OC, 128)              # lane-dense output channels
    tm = min(512, _round_up(M, 8))        # M tile, multiple of 8 sublanes
    Mp = _round_up(M, tm)
    n_tiles = Mp // tm

    # bf16 MXU operands (f32 accumulation in-kernel). Padded rows/channels are
    # zero; zero rows contribute nothing to sum/sumsq and get sliced off.
    patches_p = jnp.pad(patches, ((0, Mp - M), (0, 0))).astype(jnp.bfloat16)
    w2d = jnp.pad(weight.reshape(OC, K).T, ((0, 0), (0, OCp - OC))).astype(jnp.bfloat16)

    # ---- pass 1: tiled leaky->matmul + per-tile partial stats ----
    y, stats = pl.pallas_call(
        _matmul_stats_kernel,
        out_shape=(
            jax.ShapeDtypeStruct((Mp, OCp), jnp.float32),
            jax.ShapeDtypeStruct((n_tiles * 8, OCp), jnp.float32),
        ),
        grid=(n_tiles,),
        in_specs=[
            pl.BlockSpec((tm, K), lambda i: (i, 0)),
            pl.BlockSpec((K, OCp), lambda i: (0, 0)),
        ],
        out_specs=(
            pl.BlockSpec((tm, OCp), lambda i: (i, 0)),
            pl.BlockSpec((8, OCp), lambda i: (i, 0)),
        ),
        compiler_params=pltpu.CompilerParams(dimension_semantics=("parallel",)),
    )(patches_p, w2d)

    # ---- tiny global reduction of the per-tile stats (plain JAX, O(OC)) ----
    stats = stats.reshape(n_tiles, 8, OCp)
    ch_sum = jnp.sum(stats[:, 0, :], axis=0)
    ch_sqsum = jnp.sum(stats[:, 1, :], axis=0)
    mean = ch_sum / M                                   # divide by TRUE M
    var = jnp.maximum(ch_sqsum / M - mean * mean, 0.0)  # biased var, clamp fp error
    gamma_p = jnp.pad(gamma.astype(jnp.float32), (0, OCp - OC), constant_values=1.0)
    beta_p = jnp.pad(beta.astype(jnp.float32), (0, OCp - OC))
    scale = (gamma_p * jax.lax.rsqrt(var + EPS)).reshape(1, OCp)
    shift = (beta_p - mean * gamma_p * jax.lax.rsqrt(var + EPS)).reshape(1, OCp)
    # TODO(synk): BatchNorm running_mean/running_var updates (training-time
    # module state side effect) are not tracked here.

    # ---- pass 2: tiled normalization y*scale + shift ----
    out2d = pl.pallas_call(
        _bn_apply_kernel,
        out_shape=jax.ShapeDtypeStruct((Mp, OCp), jnp.float32),
        grid=(n_tiles,),
        in_specs=[
            pl.BlockSpec((tm, OCp), lambda i: (i, 0)),
            pl.BlockSpec((1, OCp), lambda i: (0, 0)),
            pl.BlockSpec((1, OCp), lambda i: (0, 0)),
        ],
        out_specs=pl.BlockSpec((tm, OCp), lambda i: (i, 0)),
        compiler_params=pltpu.CompilerParams(dimension_semantics=("parallel",)),
    )(y, scale, shift)

    # back to NCHW (kept for PyTorch-module parity; see TODO above re. NHWC)
    out = out2d[:M, :OC].reshape(N, Ho, Wo, OC)
    return out.transpose(0, 3, 1, 2)


if __name__ == "__main__":
    key = jax.random.PRNGKey(0)
    k_x, k_w, k_g, k_b = jax.random.split(key, 4)

    N, C_IN, H, W = 2, 4, 16, 16
    C_OUT, KH, KW = 8, 4, 4

    x = jax.random.normal(k_x, (N, C_IN, H, W), dtype=jnp.float32)
    fan_in = C_IN * KH * KW
    weight = jax.random.normal(k_w, (C_OUT, C_IN, KH, KW), dtype=jnp.float32)
    weight = weight * (1.0 / jnp.sqrt(fan_in))
    gamma = 1.0 + 0.1 * jax.random.normal(k_g, (C_OUT,), dtype=jnp.float32)
    beta = 0.1 * jax.random.normal(k_b, (C_OUT,), dtype=jnp.float32)

    out = conv_bn_leaky(x, weight, gamma, beta)
    jax.block_until_ready(out)
    assert out.shape == (N, C_OUT, 8, 8), out.shape
    assert bool(jnp.all(jnp.isfinite(out)))
    print("KERNEL_OK")
</pallas_src>

<mosaic_0001>
module attributes {stable_mosaic.version = 11 : i64} {
  func.func @_matmul_stats_kernel(%arg0: i32, %arg1: memref<128x64xbf16, #tpu.memory_space<vmem>>, %arg2: memref<64x128xbf16, #tpu.memory_space<vmem>>, %arg3: memref<128x128xf32, #tpu.memory_space<vmem>>, %arg4: memref<8x128xf32, #tpu.memory_space<vmem>>) attributes {dimension_semantics = [#tpu.dimension_semantics<parallel>], iteration_bounds = array<i64: 1>, scalar_prefetch = 0 : i64, scratch_operands = 0 : i64, tpu.core_type = #tpu.core_type<tc>, window_params = [{transform_indices = @transform_0, window_bounds = array<i64: 128, 64>}, {pipeline_mode = #tpu.pipeline_mode<synchronous>, transform_indices = @transform_1, window_bounds = array<i64: 64, 128>}, {transform_indices = @transform_2, window_bounds = array<i64: 128, 128>}, {transform_indices = @transform_3, window_bounds = array<i64: 8, 128>}]} {
    %c0 = arith.constant 0 : index
    %c0_0 = arith.constant 0 : index
    %0 = vector.load %arg1[%c0, %c0_0] : memref<128x64xbf16, #tpu.memory_space<vmem>>, vector<128x64xbf16>
    %c0_1 = arith.constant 0 : index
    %c0_2 = arith.constant 0 : index
    %1 = vector.load %arg2[%c0_1, %c0_2] : memref<64x128xbf16, #tpu.memory_space<vmem>>, vector<64x128xbf16>
    %cst = arith.constant dense<0.000000e+00> : vector<128x128xf32>
    %2 = tpu.matmul %0, %1, %cst {dimension_numbers = #tpu.dot_dimension_numbers<[1], [0], [0], [1], [0, 0, 1, 1], [], []>} : vector<128x64xbf16>, vector<64x128xbf16>, vector<128x128xf32> -> vector<128x128xf32>
    %c0_3 = arith.constant 0 : index
    %c0_4 = arith.constant 0 : index
    %3 = vector.load %arg3[%c0_3, %c0_4] : memref<128x128xf32, #tpu.memory_space<vmem>>, vector<128x128xf32>
    tpu.vector_store %arg3[%c0_3, %c0_4], %2 {strides = array<i32>} : memref<128x128xf32, #tpu.memory_space<vmem>>, vector<128x128xf32>,
    %cst_5 = arith.constant dense<0.000000e+00> : vector<128xf32>
    %4 = vector.multi_reduction <add>, %2, %cst_5 [0] : vector<128x128xf32> to vector<128xf32>
    %5 = vector.shape_cast %4 : vector<128xf32> to vector<1x128xf32>
    %6 = arith.mulf %2, %2 : vector<128x128xf32>
    %cst_6 = arith.constant dense<0.000000e+00> : vector<128xf32>
    %7 = vector.multi_reduction <add>, %6, %cst_6 [0] : vector<128x128xf32> to vector<128xf32>
    %8 = vector.shape_cast %7 : vector<128xf32> to vector<1x128xf32>
    %cst_7 = arith.constant 0.000000e+00 : f32
    %9 = vector.broadcast %cst_7 : f32 to vector<6x128xf32>
    %10 = tpu.concatenate %5, %8, %9 in 0 : vector<1x128xf32>, vector<1x128xf32>, vector<6x128xf32> -> vector<8x128xf32>
    %c0_8 = arith.constant 0 : index
    %c0_9 = arith.constant 0 : index
    %11 = vector.load %arg4[%c0_8, %c0_9] : memref<8x128xf32, #tpu.memory_space<vmem>>, vector<8x128xf32>
    tpu.vector_store %arg4[%c0_8, %c0_9], %10 {strides = array<i32>} : memref<8x128xf32, #tpu.memory_space<vmem>>, vector<8x128xf32>,
    return
  }
  func.func @transform_0(%arg0: i32) -> (i32, i32) {
    %c0_i32 = arith.constant 0 : i32
    %c0_i32_0 = arith.constant 0 : i32
    return %arg0, %c0_i32 : i32, i32
  }
  func.func @transform_1(%arg0: i32) -> (i32, i32) {
    %c0_i32 = arith.constant 0 : i32
    %c0_i32_0 = arith.constant 0 : i32
    %c0_i32_1 = arith.constant 0 : i32
    return %c0_i32, %c0_i32_0 : i32, i32
  }
  func.func @transform_2(%arg0: i32) -> (i32, i32) {
    %c0_i32 = arith.constant 0 : i32
    %c0_i32_0 = arith.constant 0 : i32
    return %arg0, %c0_i32 : i32, i32
  }
  func.func @transform_3(%arg0: i32) -> (i32, i32) {
    %c0_i32 = arith.constant 0 : i32
    %c0_i32_0 = arith.constant 0 : i32
    return %arg0, %c0_i32 : i32, i32
  }
}

</mosaic_0001>

<llo_original>
// kernel: tpu_custom_call.1
$region0: #{tpu_custom_call.1}
  #allocation0 [shape = 'u32[]', space=smem, size = 0x4, offset = 0x4, fixed_abs, tag = 'smem constant byte address 0x4 - core index']
  #allocation1 [shape = 'u32[144,128]{1,0:T(1,128)}', space=vmem, size = 0x12000, scoped, tag = 'internal scratch']
  %s0 = inlined_call_operand.vmem [shape: bf16[128,64], index: 0, kind: input, shape index: {}]
  %s1 = inlined_call_operand.vmem [shape: bf16[64,128], index: 1, kind: input, shape index: {}]
  %s2 = inlined_call_operand.hbm [shape: f32[128,128], index: 2, kind: output, shape index: {0}]
  %s3 = inlined_call_operand.hbm [shape: f32[8,128], index: 3, kind: output, shape index: {1}]
  %4 = xla_tuple %s2, %s3
  %s5 = sld [smem:[#allocation0]]
  $region26: #{tpu_custom_call.1} parent=0
    _
  %s7 = ssub.s32 1, %s5
  %s8 = scalar_select 0, %s7, %s5
  $region1: #{tpu_custom_call.1} parent=0
    #allocation2 [shape = 'u8[65536]{0}', space=vmem, size = 0x10000, scoped, tag = 'output window, operand 0, single buffered']
    #allocation3 [shape = 's32[1]{0}', space=sflag, size = 0x4, scoped, tag = 'scoped memory for tpu_custom_call.1']
    #allocation4 [shape = 'u8[4096]{0}', space=vmem, size = 0x1000, scoped, tag = 'output window, operand 1, single buffered']
    #allocation5 [shape = 's32[1]{0}', space=sflag, size = 0x4, scoped, tag = 'scoped memory for tpu_custom_call.1']
    %9 = vsyncpa [#allocation3], 0
    %10 = vsyncpa [#allocation5], 0
    // Predicated region
    $region2: #{tpu_custom_call.1} parent=1 // pred_check
      _
    $region3: #{tpu_custom_call.1} parent=1 // pred_check_branch
      %12 = sbr.rel (0) target = $region5
    $region4: #{tpu_custom_call.1} parent=1 // pred_region
      _
    $region5: #{tpu_custom_call.1} parent=1 // pred_fallthru
      _
    // Predicated region
    $region6: #{tpu_custom_call.1} parent=1 // pred_check
      _
    $region7: #{tpu_custom_call.1} parent=1 // pred_check_branch
      %14 = sbr.rel (0) target = $region9
    $region8: #{tpu_custom_call.1} parent=1 // pred_region
      _
    $region9: #{tpu_custom_call.1} parent=1 // pred_fallthru
      _
    %v16 = vld [vmem:[%s0] sm:$0xf]
    %v17 = vld [vmem:[%s0 + $0x4] sm:$0xf]
    %v18 = vld [vmem:[%s0 + $0x8] sm:$0xf]
    %v19 = vld [vmem:[%s0 + $0xc] sm:$0xf]
    %v20 = vld [vmem:[%s0 + $0x10] sm:$0xf]
    %v21 = vld [vmem:[%s0 + $0x14] sm:$0xf]
    %v22 = vld [vmem:[%s0 + $0x18] sm:$0xf]
    %v23 = vld [vmem:[%s0 + $0x1c] sm:$0xf]
    %v24 = vld [vmem:[%s0 + $0x20] sm:$0xf]
    %v25 = vld [vmem:[%s0 + $0x24] sm:$0xf]
    %v26 = vld [vmem:[%s0 + $0x28] sm:$0xf]
    %v27 = vld [vmem:[%s0 + $0x2c] sm:$0xf]
    %v28 = vld [vmem:[%s0 + $0x30] sm:$0xf]
    %v29 = vld [vmem:[%s0 + $0x34] sm:$0xf]
    %v30 = vld [vmem:[%s0 + $0x38] sm:$0xf]
    %v31 = vld [vmem:[%s0 + $0x3c] sm:$0xf]
    %v32 = vld [vmem:[%s1] sm:$0xf]
    %v33 = vld [vmem:[%s1 + $0x4] sm:$0xf]
    %v34 = vld [vmem:[%s1 + $0x8] sm:$0xf]
    %v35 = vld [vmem:[%s1 + $0xc] sm:$0xf]
    %v36 = vld [vmem:[%s1 + $0x10] sm:$0xf]
    %v37 = vld [vmem:[%s1 + $0x14] sm:$0xf]
    %v38 = vld [vmem:[%s1 + $0x18] sm:$0xf]
    %v39 = vld [vmem:[%s1 + $0x1c] sm:$0xf]
    %v56 = vunpack.c.l.b16 %v16
    %v57 = vunpack.c.l.b16 %v17
    %v58 = vunpack.c.l.b16 %v18
    %v59 = vunpack.c.l.b16 %v19
    %v60 = vunpack.c.l.b16 %v20
    %v61 = vunpack.c.l.b16 %v21
    %v62 = vunpack.c.l.b16 %v22
    %v63 = vunpack.c.l.b16 %v23
    %v64 = vunpack.c.l.b16 %v24
    %v65 = vunpack.c.l.b16 %v25
    %v66 = vunpack.c.l.b16 %v26
    %v67 = vunpack.c.l.b16 %v27
    %v68 = vunpack.c.l.b16 %v28
    %v69 = vunpack.c.l.b16 %v29
    %v70 = vunpack.c.l.b16 %v30
    %v71 = vunpack.c.l.b16 %v31
    %v72 = vpack.c.b16 %v57, %v56
    %v73 = vpack.c.b16 %v59, %v58
    %v74 = vpack.c.b16 %v61, %v60
    %v75 = vpack.c.b16 %v63, %v62
    %v76 = vpack.c.b16 %v65, %v64
    %v77 = vpack.c.b16 %v67, %v66
    %v78 = vpack.c.b16 %v69, %v68
    %v79 = vpack.c.b16 %v71, %v70
    %v88 = vunpack.c.l.b16 %v32
    %v89 = vunpack.c.l.b16 %v33
    %v90 = vunpack.c.l.b16 %v34
    %v91 = vunpack.c.l.b16 %v35
    %v92 = vunpack.c.l.b16 %v36
    %v93 = vunpack.c.l.b16 %v37
    %v94 = vunpack.c.l.b16 %v38
    %v95 = vunpack.c.l.b16 %v39
    %v96 = vpack.c.b16 %v89, %v88
    %v97 = vpack.c.b16 %v91, %v90
    %v98 = vpack.c.b16 %v93, %v92
    %v99 = vpack.c.b16 %v95, %v94
    %vm104 = vcmask 523264
    %v106 = vsel %vm104, %v72, 0
    %v109 = vsel %vm104, %v73, 0
    %v112 = vsel %vm104, %v74, 0
    %v115 = vsel %vm104, %v75, 0
    %v118 = vsel %vm104, %v76, 0
    %v121 = vsel %vm104, %v77, 0
    %v124 = vsel %vm104, %v78, 0
    %v127 = vsel %vm104, %v79, 0
    %129 = vmatprep.subr.bf16.mxu0 0
    %130 = vmatpush1.bf16.msra.mxu0 %v96
    %131 = vmatprep.subr.bf16.mxu0 0
    %132 = vmatpush1.bf16.msra.mxu0 %v97
    %133 = vmatprep.subr.bf16.mxu0 0
    %134 = vmatpush1.bf16.msra.mxu0 %v98
    %135 = vmatprep.subr.bf16.mxu0 0
    %136 = vmatpush1.bf16.msra.mxu0 %v99
    %137 = vmatprep.subr.bf16.mxu0 0
    %138 = vmatpush1.bf16.msra.mxu0 0
    %139 = vmatprep.subr.bf16.mxu0 0
    %140 = vmatpush1.bf16.msra.mxu0 0
    %141 = vmatprep.subr.bf16.mxu0 0
    %142 = vmatpush1.bf16.msra.mxu0 0
    %143 = vmatprep.subr.bf16.mxu0 0
    %144 = vmatpush1.bf16.msra.mxu0 0
    %145 = vmatprep.subr.bf16.mxu0 0
    %146 = vmatpush1.bf16.msra.mxu0 0
    %147 = vmatprep.subr.bf16.mxu0 0
    %148 = vmatpush1.bf16.msra.mxu0 0
    %149 = vmatprep.subr.bf16.mxu0 0
    %150 = vmatpush1.bf16.msra.mxu0 0
    %151 = vmatprep.subr.bf16.mxu0 0
    %152 = vmatpush1.bf16.msra.mxu0 0
    %153 = vmatprep.subr.bf16.mxu0 0
    %154 = vmatpush1.bf16.msra.mxu0 0
    %155 = vmatprep.subr.bf16.mxu0 0
    %156 = vmatpush1.bf16.msra.mxu0 0
    %157 = vmatprep.subr.bf16.mxu0 0
    %158 = vmatpush1.bf16.msra.mxu0 0
    %159 = vmatprep.subr.bf16.mxu0 0
    %160 = vmatpush1.bf16.msra.mxu0 0
    %161 = vmatprep.mubr.bf16.mxu0 0
    %162 = vmatmul.mubr.bf16.gmra.mrb[0].mxu0 %v106
    %v163 = vpop.f32.mrb[0].mxu0
    %v164 = vadd.f32 0.0, %v163
    %v165 = vpop.f32.mrb[0].mxu0
    %v166 = vpop.f32.mrb[0].mxu0
    %v167 = vadd.f32 0.0, %v166
    %v168 = vpop.f32.mrb[0].mxu0
    %169 = vmatprep.mubr.bf16.mxu0 0
    %170 = vmatmul.mubr.bf16.gmra.mrb[0].mxu0 %v109
    %v171 = vpop.f32.mrb[0].mxu0
    %v172 = vadd.f32 0.0, %v171
    %v173 = vpop.f32.mrb[0].mxu0
    %v174 = vpop.f32.mrb[0].mxu0
    %v175 = vadd.f32 0.0, %v174
    %v176 = vpop.f32.mrb[0].mxu0
    %177 = vmatprep.mubr.bf16.mxu0 0
    %178 = vmatmul.mubr.bf16.gmra.mrb[0].mxu0 %v112
    %v179 = vpop.f32.mrb[0].mxu0
    %v180 = vadd.f32 0.0, %v179
    %v181 = vpop.f32.mrb[0].mxu0
    %v182 = vpop.f32.mrb[0].mxu0
    %v183 = vadd.f32 0.0, %v182
    %v184 = vpop.f32.mrb[0].mxu0
    %185 = vmatprep.mubr.bf16.mxu0 0
    %186 = vmatmul.mubr.bf16.gmra.mrb[0].mxu0 %v115
    %v187 = vpop.f32.mrb[0].mxu0
    %v188 = vadd.f32 0.0, %v187
    %v189 = vpop.f32.mrb[0].mxu0
    %v190 = vpop.f32.mrb[0].mxu0
    %v191 = vadd.f32 0.0, %v190
    %v192 = vpop.f32.mrb[0].mxu0
    %193 = vmatprep.mubr.bf16.mxu0 0
    %194 = vmatmul.mubr.bf16.gmra.mrb[0].mxu0 %v118
    %v195 = vpop.f32.mrb[0].mxu0
    %v196 = vadd.f32 0.0, %v195
    %v197 = vpop.f32.mrb[0].mxu0
    %v198 = vpop.f32.mrb[0].mxu0
    %v199 = vadd.f32 0.0, %v198
    %v200 = vpop.f32.mrb[0].mxu0
    %201 = vmatprep.mubr.bf16.mxu0 0
    %202 = vmatmul.mubr.bf16.gmra.mrb[0].mxu0 %v121
    %v203 = vpop.f32.mrb[0].mxu0
    %v204 = vadd.f32 0.0, %v203
    %v205 = vpop.f32.mrb[0].mxu0
    %v206 = vpop.f32.mrb[0].mxu0
    %v207 = vadd.f32 0.0, %v206
    %v208 = vpop.f32.mrb[0].mxu0
    %209 = vmatprep.mubr.bf16.mxu0 0
    %210 = vmatmul.mubr.bf16.gmra.mrb[0].mxu0 %v124
    %v211 = vpop.f32.mrb[0].mxu0
    %v212 = vadd.f32 0.0, %v211
    %v213 = vpop.f32.mrb[0].mxu0
    %v214 = vpop.f32.mrb[0].mxu0
    %v215 = vadd.f32 0.0, %v214
    %v216 = vpop.f32.mrb[0].mxu0
    %217 = vmatprep.mubr.bf16.mxu0 0
    %218 = vmatmul.mubr.bf16.gmra.mrb[0].mxu0 %v127
    %v219 = vpop.f32.mrb[0].mxu0
    %v220 = vadd.f32 0.0, %v219
    %v221 = vpop.f32.mrb[0].mxu0
    %v222 = vpop.f32.mrb[0].mxu0
    %v223 = vadd.f32 0.0, %v222
    %v224 = vpop.f32.mrb[0].mxu0
    %225 = vdwg.mxu0
    %226 = vst [vmem:[#allocation2] sm:$0xff] %v164
    %227 = vst [vmem:[#allocation2 + $0x8] sm:$0xff] %v167
    %228 = vst [vmem:[#allocation2 + $0x10] sm:$0xff] %v172
    %229 = vst [vmem:[#allocation2 + $0x18] sm:$0xff] %v175
    %230 = vst [vmem:[#allocation2 + $0x20] sm:$0xff] %v180
    %231 = vst [vmem:[#allocation2 + $0x28] sm:$0xff] %v183
    %232 = vst [vmem:[#allocation2 + $0x30] sm:$0xff] %v188
    %233 = vst [vmem:[#allocation2 + $0x38] sm:$0xff] %v191
    %234 = vst [vmem:[#allocation2 + $0x40] sm:$0xff] %v196
    %235 = vst [vmem:[#allocation2 + $0x48] sm:$0xff] %v199
    %236 = vst [vmem:[#allocation2 + $0x50] sm:$0xff] %v204
    %237 = vst [vmem:[#allocation2 + $0x58] sm:$0xff] %v207
    %238 = vst [vmem:[#allocation2 + $0x60] sm:$0xff] %v212
    %239 = vst [vmem:[#allocation2 + $0x68] sm:$0xff] %v215
    %240 = vst [vmem:[#allocation2 + $0x70] sm:$0xff] %v220
    %241 = vst [vmem:[#allocation2 + $0x78] sm:$0xff] %v223
    %v242 = vadd.f32 %v164, %v167
    %v243 = vadd.f32 %v242, %v172
    %v244 = vadd.f32 %v243, %v175
    %v245 = vadd.f32 %v244, %v180
    %v246 = vadd.f32 %v245, %v183
    %v247 = vadd.f32 %v246, %v188
    %v248 = vadd.f32 %v247, %v191
    %v249 = vadd.f32 %v248, %v196
    %v250 = vadd.f32 %v249, %v199
    %v251 = vadd.f32 %v250, %v204
    %v252 = vadd.f32 %v251, %v207
    %v253 = vadd.f32 %v252, %v212
    %v254 = vadd.f32 %v253, %v215
    %v255 = vadd.f32 %v254, %v220
    %v256 = vadd.f32 %v255, %v223
    %v257 = vrot.slane %v256, 4
    %v258 = vadd.f32 %v256, %v257
    %v259 = vrot.slane %v258, 2
    %v260 = vadd.f32 %v258, %v259
    %v261 = vrot.slane %v260, 1
    %v262 = vadd.f32 %v260, %v261
    %v263 = vmul.f32 %v164, %v164
    %v264 = vmul.f32 %v167, %v167
    %v265 = vmul.f32 %v172, %v172
    %v266 = vmul.f32 %v175, %v175
    %v267 = vmul.f32 %v180, %v180
    %v268 = vmul.f32 %v183, %v183
    %v269 = vmul.f32 %v188, %v188
    %v270 = vmul.f32 %v191, %v191
    %v271 = vmul.f32 %v196, %v196
    %v272 = vmul.f32 %v199, %v199
    %v273 = vmul.f32 %v204, %v204
    %v274 = vmul.f32 %v207, %v207
    %v275 = vmul.f32 %v212, %v212
    %v276 = vmul.f32 %v215, %v215
    %v277 = vmul.f32 %v220, %v220
    %v278 = vmul.f32 %v223, %v223
    %v279 = vadd.f32 %v263, %v264
    %v280 = vadd.f32 %v279, %v265
    %v281 = vadd.f32 %v280, %v266
    %v282 = vadd.f32 %v281, %v267
    %v283 = vadd.f32 %v282, %v268
    %v284 = vadd.f32 %v283, %v269
    %v285 = vadd.f32 %v284, %v270
    %v286 = vadd.f32 %v285, %v271
    %v287 = vadd.f32 %v286, %v272
    %v288 = vadd.f32 %v287, %v273
    %v289 = vadd.f32 %v288, %v274
    %v290 = vadd.f32 %v289, %v275
    %v291 = vadd.f32 %v290, %v276
    %v292 = vadd.f32 %v291, %v277
    %v293 = vadd.f32 %v292, %v278
    %v294 = vrot.slane %v293, 4
    %v295 = vadd.f32 %v293, %v294
    %v296 = vrot.slane %v295, 2
    %v297 = vadd.f32 %v295, %v296
    %v298 = vrot.slane %v297, 1
    %v299 = vadd.f32 %v297, %v298
    %vm300 = vcmask 1040384
    %v301 = vsel %vm300, %v262, %v299
    %vm302 = vcmask 1041408
    %v303 = vsel %vm302, %v301, 0.0
    %304 = vst [vmem:[#allocation4] sm:$0xff] %v303
    // Predicated region
    $region10: #{tpu_custom_call.1} parent=1 // pred_check
      _
    $region11: #{tpu_custom_call.1} parent=1 // pred_check_branch
      %306 = sbr.rel (0) target = $region13
    $region12: #{tpu_custom_call.1} parent=1 // pred_region
      %s308 = ssub.s32 2048, 2048
      %309 = vsyncadd [#allocation3], %s308
      %s310 = sshll.u32 [#allocation2], 4
      %s311 = int_to_ptr.vmem [resolvable:$true] %s310
      %316 = dma.vmem_to_hbm [thread:$0]  %s311, 2048, %s2, [#allocation3], 128, 128, 8
    $region13: #{tpu_custom_call.1} parent=1 // pred_fallthru
      _
    // Predicated region
    $region14: #{tpu_custom_call.1} parent=1 // pred_check
      _
    $region15: #{tpu_custom_call.1} parent=1 // pred_check_branch
      %318 = sbr.rel (0) target = $region17
    $region16: #{tpu_custom_call.1} parent=1 // pred_region
      %s320 = ssub.s32 128, 128
      %321 = vsyncadd [#allocation5], %s320
      %s323 = sshll.u32 [#allocation4], 4
      %s324 = int_to_ptr.vmem [resolvable:$true] %s323
      %326 = dma.vmem_to_hbm [thread:$0]  %s324, 128, %s3, [#allocation5]
    $region17: #{tpu_custom_call.1} parent=1 // pred_fallthru
      _
    // Predicated region
    $region18: #{tpu_custom_call.1} parent=1 // pred_check
      _
    $region19: #{tpu_custom_call.1} parent=1 // pred_check_branch
      %328 = sbr.rel (0) target = $region21
    $region20: #{tpu_custom_call.1} parent=1 // pred_region
      %329 = dma.done [#allocation3], 2048
    $region21: #{tpu_custom_call.1} parent=1 // pred_fallthru
      _
    // Predicated region
    $region22: #{tpu_custom_call.1} parent=1 // pred_check
      _
    $region23: #{tpu_custom_call.1} parent=1 // pred_check_branch
      %331 = sbr.rel (0) target = $region25
    $region24: #{tpu_custom_call.1} parent=1 // pred_region
      %332 = dma.done [#allocation5], 128
    $region25: #{tpu_custom_call.1} parent=1 // pred_fallthru
      _
    %333 = vsyncpa [#allocation3], 1
    %334 = vsyncpa [#allocation5], 1

</llo_original>
